<compile_context>
chip_gen: v6e
topology: v6e:2x2x1
jax: 0.10.0
libtpu: 0.0.40
codegen_flags: <defaults>
</compile_context>

<pallas_src>
import functools

import jax
import jax.numpy as jnp
from jax.experimental import pallas as pl
from jax.experimental.pallas import tpu as pltpu


def _pair(v):
    return tuple(v) if isinstance(v, (tuple, list)) else (v, v)


def _quadruple(v):
    return tuple(v) if isinstance(v, (tuple, list)) else (v, v, v, v)


def _round_up(a, m):
    return ((a + m - 1) // m) * m


def _med3(a, b, c):
    """Elementwise median of three."""
    return jnp.maximum(jnp.minimum(a, b), jnp.minimum(jnp.maximum(a, b), c))


def _min_med_max3(a, b, c):
    """Elementwise (min, median, max) of three with shared compares."""
    lo_ab = jnp.minimum(a, b)
    hi_ab = jnp.maximum(a, b)
    lo = jnp.minimum(lo_ab, c)
    hi = jnp.maximum(hi_ab, c)
    md = jnp.maximum(lo_ab, jnp.minimum(hi_ab, c))
    return lo, md, hi


def _lower_median_sort(vals):
    """Generic lower median (torch semantics) via odd-even transposition sort."""
    p = list(vals)
    n = len(p)
    for pas in range(n):
        for i in range(pas % 2, n - 1, 2):
            lo = jnp.minimum(p[i], p[i + 1])
            hi = jnp.maximum(p[i], p[i + 1])
            p[i], p[i + 1] = lo, hi
    return p[(n - 1) // 2]


def _median_pool_kernel(x_ref, o_ref, xp_ref=None, *, kh, kw, sh, sw, ho, wo,
                        pads, compute_dtype):
    # x_ref: (nc_tile, H, W) unpadded planes; o_ref: (nc_tile, Ho, Wo)
    # xp_ref (only when padding): (nc_tile, Hp, Wp) VMEM scratch.
    p_l, p_r, p_t, p_b = pads
    has_pad = bool(p_l or p_r or p_t or p_b)
    nc, h, w = x_ref.shape

    if has_pad:
        # Fused F.pad(mode='reflect'): assemble the padded plane once in VMEM
        # (no extra HBM pad pass).  Interior, then reflected rows, then
        # reflected columns (columns read back rows already written, so the
        # corners reflect in both axes exactly like F.pad).
        xp_ref[:, p_t:p_t + h, p_l:p_l + w] = x_ref[...]
        for i in range(p_t):
            xp_ref[:, i:i + 1, p_l:p_l + w] = x_ref[:, p_t - i:p_t - i + 1, :]
        for i in range(p_b):
            xp_ref[:, p_t + h + i:p_t + h + i + 1, p_l:p_l + w] = (
                x_ref[:, h - 2 - i:h - 1 - i, :])
        for j in range(p_l):
            xp_ref[:, :, j:j + 1] = xp_ref[:, :, 2 * p_l - j:2 * p_l - j + 1]
        for j in range(p_r):
            xp_ref[:, :, p_l + w + j:p_l + w + j + 1] = (
                xp_ref[:, :, p_l + w - 2 - j:p_l + w - 1 - j])
        src_ref = xp_ref
    else:
        src_ref = x_ref

    wp = src_ref.shape[2]

    if sh == 1 and sw == 1:
        def vslice(dy):
            # Static ref view -> one shifted load; cast per slice.
            return src_ref[:, dy:dy + ho, :].astype(compute_dtype)

        def hslice(arr, dx):
            return arr[:, :, dx:dx + wo]
    else:
        # TODO(synk): for stride > 1, express the stride on the DMA/index_map
        # side instead of strided in-kernel slices.
        xsrc = src_ref[...]

        def vslice(dy):
            lim = dy + sh * (ho - 1) + 1
            return jax.lax.slice(
                xsrc, (0, dy, 0), (nc, lim, wp), (1, sh, 1)).astype(compute_dtype)

        def hslice(arr, dx):
            lim = dx + sw * (wo - 1) + 1
            return jax.lax.slice(arr, (0, 0, dx), (nc, ho, lim), (1, 1, sw))

    if kh == 3 and kw == 3:
        # Separable median-of-9: vertical (min, med, max) column triples
        # computed once from the 3 row shifts, then
        # median9 = med3(max3(mins), med3(meds), min3(maxes)) horizontally.
        mn, md, mx = _min_med_max3(vslice(0), vslice(1), vslice(2))
        lo = jnp.maximum(jnp.maximum(hslice(mn, 0), hslice(mn, 1)), hslice(mn, 2))
        hi = jnp.minimum(jnp.minimum(hslice(mx, 0), hslice(mx, 1)), hslice(mx, 2))
        mid = _med3(hslice(md, 0), hslice(md, 1), hslice(md, 2))
        med = _med3(lo, mid, hi)
    else:
        vals = []
        for dy in range(kh):
            row = vslice(dy)
            for dx in range(kw):
                vals.append(hslice(row, dx))
        med = _lower_median_sort(vals)

    o_ref[...] = med.astype(o_ref.dtype)


def _tpu_config():
    """(device_kind, physical VMEM bytes, tensorcores per chip) — best effort."""
    try:
        kind = jax.devices()[0].device_kind.lower()
    except Exception:
        kind = ""
    vmem_phys = None
    try:
        info = pltpu.get_tpu_info()
        vmem_phys = int(getattr(info, "vmem_capacity_bytes", 0)) or None
    except Exception:
        vmem_phys = None
    is_v7 = ("v7" in kind) or ("7x" in kind)
    if vmem_phys is None:
        vmem_phys = (64 if is_v7 else 128) * 1024 * 1024
    n_cores = 2 if is_v7 else 1
    return kind, vmem_phys, n_cores


def _compute_dtype_for(dtype, kind):
    """bf16 compute only on chips whitelisted with a bf16 VPU; else f32 (safe)."""
    dt = jnp.dtype(dtype)
    if dt != jnp.dtype(jnp.bfloat16):
        return dt
    if any(t in kind for t in ("v6", "v7", "7x", "trillium")):
        return dt
    return jnp.dtype(jnp.float32)


def _plane_bytes(h, w, dtype):
    """Per-plane VMEM bytes including (8,128) tile padding."""
    it = jnp.dtype(dtype).itemsize
    sub = max(8, 32 // max(it, 1))  # f32: 8, bf16: 16, int8: 32 sublanes/tile
    return _round_up(max(h, 1), sub) * _round_up(max(w, 1), 128) * it


def _choose_nc_tile(nc, h, w, hp, wp, ho, wo, kh, kw, in_dtype, out_dtype,
                    compute_dtype, budget_bytes, prefer_steps):
    """Largest per-step NC depth whose (8,128)-padded VMEM footprint fits."""
    in_plane = _plane_bytes(h, w, in_dtype)
    out_plane = _plane_bytes(ho, wo, out_dtype)
    pad_plane = _plane_bytes(hp, wp, in_dtype) if (hp != h or wp != w) else 0
    if kh == 3 and kw == 3:
        tmp = (4 * _plane_bytes(ho, wp, compute_dtype)
               + 6 * _plane_bytes(ho, wo, compute_dtype))
    else:
        tmp = ((kh + 1) * _plane_bytes(ho, wp, compute_dtype)
               + (kh * kw + 4) * _plane_bytes(ho, wo, compute_dtype))
    # Double-buffered in/out DMA blocks + padded-plane scratch + live temps.
    per_plane = 2 * (in_plane + out_plane) + pad_plane + tmp
    max_tile = max(1, int(budget_bytes) // per_plane)
    tile = min(nc, max_tile)
    if tile * per_plane > (1 << 20):
        # Enough data to amortize several grid steps: aim for prefer_steps
        # steps (pipelining / both v7x cores) but keep blocks >= ~1 MiB.
        target = max(1, -(-nc // prefer_steps))
        min_tile = max(1, (1 << 20) // per_plane)
        tile = min(tile, max(target, min_tile))
    return max(1, tile)


def median_pool2d(x, kernel_size=3, stride=1, padding=0, same=False):
    """Equivalent of MedianPool2d.forward for NCHW input x."""
    kh, kw = _pair(kernel_size)
    sh, sw = _pair(stride)
    N, C, H, W = x.shape

    # Reproduce MedianPool2d._padding
    if same:
        ph = max(kh - sh, 0) if H % sh == 0 else max(kh - H % sh, 0)
        pw = max(kw - sw, 0) if W % sw == 0 else max(kw - W % sw, 0)
        p_l = pw // 2
        p_r = pw - p_l
        p_t = ph // 2
        p_b = ph - p_t
    else:
        p_l, p_r, p_t, p_b = _quadruple(padding)

    if p_t >= H or p_b >= H or p_l >= W or p_r >= W:
        raise ValueError("reflect padding amount must be < input spatial dim")

    Hp, Wp = H + p_t + p_b, W + p_l + p_r
    Ho = (Hp - kh) // sh + 1
    Wo = (Wp - kw) // sw + 1
    if Ho <= 0 or Wo <= 0:
        raise ValueError(
            f"kernel_size {(kh, kw)} exceeds padded input {(Hp, Wp)}; "
            f"output spatial dims would be {(Ho, Wo)}")

    NC = N * C
    x_flat = x.reshape(NC, H, W)

    kind, vmem_phys, n_cores = _tpu_config()
    compute_dtype = _compute_dtype_for(x.dtype, kind)
    # ~96 MiB on 128-MiB parts (v5e/v6e), ~48 MiB on v7x (64 MiB/TC).
    vmem_limit = max(16 * 1024 * 1024,
                     min(int(vmem_phys * 3 // 4), 100 * 1024 * 1024))
    prefer_steps = 3 * n_cores
    nc_tile = _choose_nc_tile(
        NC, H, W, Hp, Wp, Ho, Wo, kh, kw, x.dtype, x.dtype, compute_dtype,
        budget_bytes=int(vmem_limit * 0.8), prefer_steps=prefer_steps)

    has_pad = bool(p_l or p_r or p_t or p_b)
    scratch_shapes = []
    if has_pad:
        scratch_shapes.append(pltpu.VMEM((nc_tile, Hp, Wp), x.dtype))

    kernel = functools.partial(
        _median_pool_kernel, kh=kh, kw=kw, sh=sh, sw=sw, ho=Ho, wo=Wo,
        pads=(p_l, p_r, p_t, p_b), compute_dtype=compute_dtype)

    out_flat = pl.pallas_call(
        kernel,
        out_shape=jax.ShapeDtypeStruct((NC, Ho, Wo), x.dtype),
        grid_spec=pltpu.PrefetchScalarGridSpec(
            num_scalar_prefetch=0,
            grid=(pl.cdiv(NC, nc_tile),),
            in_specs=[pl.BlockSpec((nc_tile, H, W), lambda i: (i, 0, 0))],
            out_specs=pl.BlockSpec((nc_tile, Ho, Wo), lambda i: (i, 0, 0)),
            scratch_shapes=tuple(scratch_shapes),
        ),
        compiler_params=pltpu.CompilerParams(
            dimension_semantics=("parallel",),
            vmem_limit_bytes=vmem_limit,
        ),
    )(x_flat)

    return out_flat.reshape(N, C, Ho, Wo)


def _median_pool2d_ref(x, kernel_size=3, stride=1, padding=0, same=False):
    """Pure-JAX reference mirroring the PyTorch forward pass."""
    kh, kw = _pair(kernel_size)
    sh, sw = _pair(stride)
    N, C, H, W = x.shape
    if same:
        ph = max(kh - sh, 0) if H % sh == 0 else max(kh - H % sh, 0)
        pw = max(kw - sw, 0) if W % sw == 0 else max(kw - W % sw, 0)
        p_l = pw // 2
        p_r = pw - p_l
        p_t = ph // 2
        p_b = ph - p_t
    else:
        p_l, p_r, p_t, p_b = _quadruple(padding)
    if p_l or p_r or p_t or p_b:
        x = jnp.pad(x, ((0, 0), (0, 0), (p_t, p_b), (p_l, p_r)), mode="reflect")
    Hp, Wp = x.shape[2], x.shape[3]
    Ho = (Hp - kh) // sh + 1
    Wo = (Wp - kw) // sw + 1
    windows = []
    for dy in range(kh):
        for dx in range(kw):
            windows.append(
                x[:, :, dy: dy + sh * (Ho - 1) + 1: sh,
                        dx: dx + sw * (Wo - 1) + 1: sw])
    stacked = jnp.stack(windows, axis=-1)
    sorted_vals = jnp.sort(stacked, axis=-1)
    return sorted_vals[..., (kh * kw - 1) // 2]


if __name__ == "__main__":
    key = jax.random.PRNGKey(0)
    x = jax.random.normal(key, (2, 4, 16, 16), dtype=jnp.float32)

    # Default module config: kernel_size=3, stride=1, padding=0, same=False
    out = jax.block_until_ready(median_pool2d(x))
    ref = _median_pool2d_ref(x)
    assert out.shape == (2, 4, 14, 14), out.shape
    assert jnp.allclose(out, ref), "Pallas median pool mismatch (default config)"

    # same=True (in-kernel reflect padding) config
    out_same = jax.block_until_ready(median_pool2d(x, same=True))
    ref_same = _median_pool2d_ref(x, same=True)
    assert out_same.shape == (2, 4, 16, 16), out_same.shape
    assert jnp.allclose(out_same, ref_same), "Pallas median pool mismatch (same=True)"

    # bf16 input (bf16 compute on v6e/v7x; f32 compute elsewhere)
    xb = x.astype(jnp.bfloat16)
    out_b = jax.block_until_ready(median_pool2d(xb))
    ref_b = _median_pool2d_ref(xb)
    assert out_b.dtype == jnp.bfloat16
    assert jnp.allclose(out_b, ref_b), "Pallas median pool mismatch (bf16)"

    print("KERNEL_OK")
</pallas_src>

<mosaic_0001>
module attributes {stable_mosaic.version = 11 : i64} {
  func.func @_median_pool_kernel(%arg0: i32, %arg1: memref<8x16x16xf32, #tpu.memory_space<vmem>>, %arg2: memref<8x14x14xf32, #tpu.memory_space<vmem>>) attributes {dimension_semantics = [#tpu.dimension_semantics<parallel>], iteration_bounds = array<i64: 1>, scalar_prefetch = 0 : i64, scratch_operands = 0 : i64, tpu.core_type = #tpu.core_type<tc>, window_params = [{transform_indices = @transform_0, window_bounds = array<i64: 8, 16, 16>}, {transform_indices = @transform_1, window_bounds = array<i64: 8, 14, 14>}]} {
    %c0 = arith.constant 0 : index
    %c0_0 = arith.constant 0 : index
    %c0_1 = arith.constant 0 : index
    %0 = vector.load %arg1[%c0, %c0_0, %c0_1] : memref<8x16x16xf32, #tpu.memory_space<vmem>>, vector<8x14x16xf32>
    %c0_2 = arith.constant 0 : index
    %c1 = arith.constant 1 : index
    %c0_3 = arith.constant 0 : index
    %1 = vector.load %arg1[%c0_2, %c1, %c0_3] : memref<8x16x16xf32, #tpu.memory_space<vmem>>, vector<8x14x16xf32>
    %c0_4 = arith.constant 0 : index
    %c2 = arith.constant 2 : index
    %c0_5 = arith.constant 0 : index
    %2 = vector.load %arg1[%c0_4, %c2, %c0_5] : memref<8x16x16xf32, #tpu.memory_space<vmem>>, vector<8x14x16xf32>
    %3 = arith.minimumf %0, %1 : vector<8x14x16xf32>
    %4 = arith.maximumf %0, %1 : vector<8x14x16xf32>
    %5 = arith.minimumf %3, %2 : vector<8x14x16xf32>
    %6 = arith.maximumf %4, %2 : vector<8x14x16xf32>
    %7 = arith.minimumf %4, %2 : vector<8x14x16xf32>
    %8 = arith.maximumf %3, %7 : vector<8x14x16xf32>
    %9 = vector.extract_strided_slice %5 {offsets = [0, 0, 0], sizes = [8, 14, 14], strides = [1, 1, 1]} : vector<8x14x16xf32> to vector<8x14x14xf32>
    %10 = vector.extract_strided_slice %5 {offsets = [0, 0, 1], sizes = [8, 14, 14], strides = [1, 1, 1]} : vector<8x14x16xf32> to vector<8x14x14xf32>
    %11 = arith.maximumf %9, %10 : vector<8x14x14xf32>
    %12 = vector.extract_strided_slice %5 {offsets = [0, 0, 2], sizes = [8, 14, 14], strides = [1, 1, 1]} : vector<8x14x16xf32> to vector<8x14x14xf32>
    %13 = arith.maximumf %11, %12 : vector<8x14x14xf32>
    %14 = vector.extract_strided_slice %6 {offsets = [0, 0, 0], sizes = [8, 14, 14], strides = [1, 1, 1]} : vector<8x14x16xf32> to vector<8x14x14xf32>
    %15 = vector.extract_strided_slice %6 {offsets = [0, 0, 1], sizes = [8, 14, 14], strides = [1, 1, 1]} : vector<8x14x16xf32> to vector<8x14x14xf32>
    %16 = arith.minimumf %14, %15 : vector<8x14x14xf32>
    %17 = vector.extract_strided_slice %6 {offsets = [0, 0, 2], sizes = [8, 14, 14], strides = [1, 1, 1]} : vector<8x14x16xf32> to vector<8x14x14xf32>
    %18 = arith.minimumf %16, %17 : vector<8x14x14xf32>
    %19 = vector.extract_strided_slice %8 {offsets = [0, 0, 0], sizes = [8, 14, 14], strides = [1, 1, 1]} : vector<8x14x16xf32> to vector<8x14x14xf32>
    %20 = vector.extract_strided_slice %8 {offsets = [0, 0, 1], sizes = [8, 14, 14], strides = [1, 1, 1]} : vector<8x14x16xf32> to vector<8x14x14xf32>
    %21 = vector.extract_strided_slice %8 {offsets = [0, 0, 2], sizes = [8, 14, 14], strides = [1, 1, 1]} : vector<8x14x16xf32> to vector<8x14x14xf32>
    %22 = arith.minimumf %19, %20 : vector<8x14x14xf32>
    %23 = arith.maximumf %19, %20 : vector<8x14x14xf32>
    %24 = arith.minimumf %23, %21 : vector<8x14x14xf32>
    %25 = arith.maximumf %22, %24 : vector<8x14x14xf32>
    %26 = arith.minimumf %13, %25 : vector<8x14x14xf32>
    %27 = arith.maximumf %13, %25 : vector<8x14x14xf32>
    %28 = arith.minimumf %27, %18 : vector<8x14x14xf32>
    %29 = arith.maximumf %26, %28 : vector<8x14x14xf32>
    %c0_6 = arith.constant 0 : index
    %c0_7 = arith.constant 0 : index
    %c0_8 = arith.constant 0 : index
    %30 = vector.load %arg2[%c0_6, %c0_7, %c0_8] : memref<8x14x14xf32, #tpu.memory_space<vmem>>, vector<8x14x14xf32>
    tpu.vector_store %arg2[%c0_6, %c0_7, %c0_8], %29 {strides = array<i32>} : memref<8x14x14xf32, #tpu.memory_space<vmem>>, vector<8x14x14xf32>,
    return
  }
  func.func @transform_0(%arg0: i32) -> (i32, i32, i32) {
    %c0_i32 = arith.constant 0 : i32
    %c0_i32_0 = arith.constant 0 : i32
    %c0_i32_1 = arith.constant 0 : i32
    return %arg0, %c0_i32, %c0_i32_0 : i32, i32, i32
  }
  func.func @transform_1(%arg0: i32) -> (i32, i32, i32) {
    %c0_i32 = arith.constant 0 : i32
    %c0_i32_0 = arith.constant 0 : i32
    %c0_i32_1 = arith.constant 0 : i32
    return %arg0, %c0_i32, %c0_i32_0 : i32, i32, i32
  }
}

</mosaic_0001>

<llo_original>
// kernel: tpu_custom_call.1
$region0: #{tpu_custom_call.1}
  #allocation0 [shape = 'u32[]', space=smem, size = 0x4, offset = 0x4, fixed_abs, tag = 'smem constant byte address 0x4 - core index']
  #allocation1 [shape = 'u32[144,128]{1,0:T(1,128)}', space=vmem, size = 0x12000, scoped, tag = 'internal scratch']
  %s0 = inlined_call_operand.hbm [shape: f32[8,16,16], index: 0, kind: input, shape index: {}]
  %s1 = inlined_call_operand.vmem [shape: f32[8,14,14], index: 1, kind: output, shape index: {}]
  %s2 = sld [smem:[#allocation0]]
  $region18: #{tpu_custom_call.1} parent=0
    _
  %s4 = ssub.s32 1, %s2
  %s5 = scalar_select 0, %s4, %s2
  $region1: #{tpu_custom_call.1} parent=0
    #allocation2 [shape = 'u8[65536]{0}', space=vmem, size = 0x10000, scoped, tag = 'input window, operand 0, single buffered']
    #allocation3 [shape = 's32[1]{0}', space=sflag, size = 0x4, scoped, tag = 'scoped memory for tpu_custom_call.1']
    %6 = vsyncpa [#allocation3], 0
    // Predicated region
    $region2: #{tpu_custom_call.1} parent=1 // pred_check
      _
    $region3: #{tpu_custom_call.1} parent=1 // pred_check_branch
      %8 = sbr.rel (0) target = $region5
    $region4: #{tpu_custom_call.1} parent=1 // pred_region
      %s10 = ssub.s32 2048, 2048
      %11 = vsyncadd [#allocation3], %s10
      %s12 = sshll.u32 [#allocation2], 4
      %s13 = int_to_ptr.vmem [resolvable:$true] %s12
      %18 = dma.hbm_to_vmem [thread:$0]  %s0, 2048, %s13, [#allocation3], 128, 128, 8
    $region5: #{tpu_custom_call.1} parent=1 // pred_fallthru
      _
    // Predicated region
    $region6: #{tpu_custom_call.1} parent=1 // pred_check
      _
    $region7: #{tpu_custom_call.1} parent=1 // pred_check_branch
      %20 = sbr.rel (0) target = $region9
    $region8: #{tpu_custom_call.1} parent=1 // pred_region
      %21 = dma.done [#allocation3], 2048
    $region9: #{tpu_custom_call.1} parent=1 // pred_fallthru
      _
    %v22 = vld [vmem:[#allocation2] sm:$0xff]
    %v23 = vld [vmem:[#allocation2 + $0x8] sm:$0x3f]
    %v24 = vld [vmem:[#allocation2 + $0x10] sm:$0xff]
    %v25 = vld [vmem:[#allocation2 + $0x18] sm:$0x3f]
    %v26 = vld [vmem:[#allocation2 + $0x20] sm:$0xff]
    %v27 = vld [vmem:[#allocation2 + $0x28] sm:$0x3f]
    %v28 = vld [vmem:[#allocation2 + $0x30] sm:$0xff]
    %v29 = vld [vmem:[#allocation2 + $0x38] sm:$0x3f]
    %v30 = vld [vmem:[#allocation2 + $0x40] sm:$0xff]
    %v31 = vld [vmem:[#allocation2 + $0x48] sm:$0x3f]
    %v32 = vld [vmem:[#allocation2 + $0x50] sm:$0xff]
    %v33 = vld [vmem:[#allocation2 + $0x58] sm:$0x3f]
    %v34 = vld [vmem:[#allocation2 + $0x60] sm:$0xff]
    %v35 = vld [vmem:[#allocation2 + $0x68] sm:$0x3f]
    %v36 = vld [vmem:[#allocation2 + $0x70] sm:$0xff]
    %v37 = vld [vmem:[#allocation2 + $0x78] sm:$0x3f]
    %v38 = vld [vmem:[#allocation2 + $0x1] sm:$0xff]
    %v39 = vld [vmem:[#allocation2 + $0x9] sm:$0x3f]
    %v40 = vld [vmem:[#allocation2 + $0x11] sm:$0xff]
    %v41 = vld [vmem:[#allocation2 + $0x19] sm:$0x3f]
    %v42 = vld [vmem:[#allocation2 + $0x21] sm:$0xff]
    %v43 = vld [vmem:[#allocation2 + $0x29] sm:$0x3f]
    %v44 = vld [vmem:[#allocation2 + $0x31] sm:$0xff]
    %v45 = vld [vmem:[#allocation2 + $0x39] sm:$0x3f]
    %v46 = vld [vmem:[#allocation2 + $0x41] sm:$0xff]
    %v47 = vld [vmem:[#allocation2 + $0x49] sm:$0x3f]
    %v48 = vld [vmem:[#allocation2 + $0x51] sm:$0xff]
    %v49 = vld [vmem:[#allocation2 + $0x59] sm:$0x3f]
    %v50 = vld [vmem:[#allocation2 + $0x61] sm:$0xff]
    %v51 = vld [vmem:[#allocation2 + $0x69] sm:$0x3f]
    %v52 = vld [vmem:[#allocation2 + $0x71] sm:$0xff]
    %v53 = vld [vmem:[#allocation2 + $0x79] sm:$0x3f]
    %v54 = vld [vmem:[#allocation2 + $0x2] sm:$0xff]
    %v55 = vld [vmem:[#allocation2 + $0xa] sm:$0x3f]
    %v56 = vld [vmem:[#allocation2 + $0x12] sm:$0xff]
    %v57 = vld [vmem:[#allocation2 + $0x1a] sm:$0x3f]
    %v58 = vld [vmem:[#allocation2 + $0x22] sm:$0xff]
    %v59 = vld [vmem:[#allocation2 + $0x2a] sm:$0x3f]
    %v60 = vld [vmem:[#allocation2 + $0x32] sm:$0xff]
    %v61 = vld [vmem:[#allocation2 + $0x3a] sm:$0x3f]
    %v62 = vld [vmem:[#allocation2 + $0x42] sm:$0xff]
    %v63 = vld [vmem:[#allocation2 + $0x4a] sm:$0x3f]
    %v64 = vld [vmem:[#allocation2 + $0x52] sm:$0xff]
    %v65 = vld [vmem:[#allocation2 + $0x5a] sm:$0x3f]
    %v66 = vld [vmem:[#allocation2 + $0x62] sm:$0xff]
    %v67 = vld [vmem:[#allocation2 + $0x6a] sm:$0x3f]
    %v68 = vld [vmem:[#allocation2 + $0x72] sm:$0xff]
    %v69 = vld [vmem:[#allocation2 + $0x7a] sm:$0x3f]
    %v70 = vmin.f32 %v22, %v38
    %v71 = vmin.f32 %v23, %v39
    %v72 = vmin.f32 %v24, %v40
    %v73 = vmin.f32 %v25, %v41
    %v74 = vmin.f32 %v26, %v42
    %v75 = vmin.f32 %v27, %v43
    %v76 = vmin.f32 %v28, %v44
    %v77 = vmin.f32 %v29, %v45
    %v78 = vmin.f32 %v30, %v46
    %v79 = vmin.f32 %v31, %v47
    %v80 = vmin.f32 %v32, %v48
    %v81 = vmin.f32 %v33, %v49
    %v82 = vmin.f32 %v34, %v50
    %v83 = vmin.f32 %v35, %v51
    %v84 = vmin.f32 %v36, %v52
    %v85 = vmin.f32 %v37, %v53
    %v86 = vmax.f32 %v22, %v38
    %v87 = vmax.f32 %v23, %v39
    %v88 = vmax.f32 %v24, %v40
    %v89 = vmax.f32 %v25, %v41
    %v90 = vmax.f32 %v26, %v42
    %v91 = vmax.f32 %v27, %v43
    %v92 = vmax.f32 %v28, %v44
    %v93 = vmax.f32 %v29, %v45
    %v94 = vmax.f32 %v30, %v46
    %v95 = vmax.f32 %v31, %v47
    %v96 = vmax.f32 %v32, %v48
    %v97 = vmax.f32 %v33, %v49
    %v98 = vmax.f32 %v34, %v50
    %v99 = vmax.f32 %v35, %v51
    %v100 = vmax.f32 %v36, %v52
    %v101 = vmax.f32 %v37, %v53
    %v102 = vmin.f32 %v70, %v54
    %v103 = vmin.f32 %v71, %v55
    %v104 = vmin.f32 %v72, %v56
    %v105 = vmin.f32 %v73, %v57
    %v106 = vmin.f32 %v74, %v58
    %v107 = vmin.f32 %v75, %v59
    %v108 = vmin.f32 %v76, %v60
    %v109 = vmin.f32 %v77, %v61
    %v110 = vmin.f32 %v78, %v62
    %v111 = vmin.f32 %v79, %v63
    %v112 = vmin.f32 %v80, %v64
    %v113 = vmin.f32 %v81, %v65
    %v114 = vmin.f32 %v82, %v66
    %v115 = vmin.f32 %v83, %v67
    %v116 = vmin.f32 %v84, %v68
    %v117 = vmin.f32 %v85, %v69
    %v118 = vmax.f32 %v86, %v54
    %v119 = vmax.f32 %v87, %v55
    %v120 = vmax.f32 %v88, %v56
    %v121 = vmax.f32 %v89, %v57
    %v122 = vmax.f32 %v90, %v58
    %v123 = vmax.f32 %v91, %v59
    %v124 = vmax.f32 %v92, %v60
    %v125 = vmax.f32 %v93, %v61
    %v126 = vmax.f32 %v94, %v62
    %v127 = vmax.f32 %v95, %v63
    %v128 = vmax.f32 %v96, %v64
    %v129 = vmax.f32 %v97, %v65
    %v130 = vmax.f32 %v98, %v66
    %v131 = vmax.f32 %v99, %v67
    %v132 = vmax.f32 %v100, %v68
    %v133 = vmax.f32 %v101, %v69
    %v134 = vmin.f32 %v86, %v54
    %v135 = vmin.f32 %v87, %v55
    %v136 = vmin.f32 %v88, %v56
    %v137 = vmin.f32 %v89, %v57
    %v138 = vmin.f32 %v90, %v58
    %v139 = vmin.f32 %v91, %v59
    %v140 = vmin.f32 %v92, %v60
    %v141 = vmin.f32 %v93, %v61
    %v142 = vmin.f32 %v94, %v62
    %v143 = vmin.f32 %v95, %v63
    %v144 = vmin.f32 %v96, %v64
    %v145 = vmin.f32 %v97, %v65
    %v146 = vmin.f32 %v98, %v66
    %v147 = vmin.f32 %v99, %v67
    %v148 = vmin.f32 %v100, %v68
    %v149 = vmin.f32 %v101, %v69
    %v150 = vmax.f32 %v70, %v134
    %v151 = vmax.f32 %v71, %v135
    %v152 = vmax.f32 %v72, %v136
    %v153 = vmax.f32 %v73, %v137
    %v154 = vmax.f32 %v74, %v138
    %v155 = vmax.f32 %v75, %v139
    %v156 = vmax.f32 %v76, %v140
    %v157 = vmax.f32 %v77, %v141
    %v158 = vmax.f32 %v78, %v142
    %v159 = vmax.f32 %v79, %v143
    %v160 = vmax.f32 %v80, %v144
    %v161 = vmax.f32 %v81, %v145
    %v162 = vmax.f32 %v82, %v146
    %v163 = vmax.f32 %v83, %v147
    %v164 = vmax.f32 %v84, %v148
    %v165 = vmax.f32 %v85, %v149
    %182 = vrot.lane.b32.xlu0 %v102, 127
    %v183 = vpop.permute.xlu0 %182
    %184 = vrot.lane.b32.xlu0 %v103, 127
    %v185 = vpop.permute.xlu0 %184
    %186 = vrot.lane.b32.xlu0 %v104, 127
    %v187 = vpop.permute.xlu0 %186
    %188 = vrot.lane.b32.xlu0 %v105, 127
    %v189 = vpop.permute.xlu0 %188
    %190 = vrot.lane.b32.xlu0 %v106, 127
    %v191 = vpop.permute.xlu0 %190
    %192 = vrot.lane.b32.xlu0 %v107, 127
    %v193 = vpop.permute.xlu0 %192
    %194 = vrot.lane.b32.xlu0 %v108, 127
    %v195 = vpop.permute.xlu0 %194
    %196 = vrot.lane.b32.xlu0 %v109, 127
    %v197 = vpop.permute.xlu0 %196
    %198 = vrot.lane.b32.xlu0 %v110, 127
    %v199 = vpop.permute.xlu0 %198
    %200 = vrot.lane.b32.xlu0 %v111, 127
    %v201 = vpop.permute.xlu0 %200
    %202 = vrot.lane.b32.xlu0 %v112, 127
    %v203 = vpop.permute.xlu0 %202
    %204 = vrot.lane.b32.xlu0 %v113, 127
    %v205 = vpop.permute.xlu0 %204
    %206 = vrot.lane.b32.xlu0 %v114, 127
    %v207 = vpop.permute.xlu0 %206
    %208 = vrot.lane.b32.xlu0 %v115, 127
    %v209 = vpop.permute.xlu0 %208
    %210 = vrot.lane.b32.xlu0 %v116, 127
    %v211 = vpop.permute.xlu0 %210
    %212 = vrot.lane.b32.xlu0 %v117, 127
    %v213 = vpop.permute.xlu0 %212
    %v230 = vmax.f32 %v102, %v183
    %v231 = vmax.f32 %v103, %v185
    %v232 = vmax.f32 %v104, %v187
    %v233 = vmax.f32 %v105, %v189
    %v234 = vmax.f32 %v106, %v191
    %v235 = vmax.f32 %v107, %v193
    %v236 = vmax.f32 %v108, %v195
    %v237 = vmax.f32 %v109, %v197
    %v238 = vmax.f32 %v110, %v199
    %v239 = vmax.f32 %v111, %v201
    %v240 = vmax.f32 %v112, %v203
    %v241 = vmax.f32 %v113, %v205
    %v242 = vmax.f32 %v114, %v207
    %v243 = vmax.f32 %v115, %v209
    %v244 = vmax.f32 %v116, %v211
    %v245 = vmax.f32 %v117, %v213
    %246 = vrot.lane.b32.xlu0 %v102, 126
    %v247 = vpop.permute.xlu0 %246
    %248 = vrot.lane.b32.xlu0 %v103, 126
    %v249 = vpop.permute.xlu0 %248
    %250 = vrot.lane.b32.xlu0 %v104, 126
    %v251 = vpop.permute.xlu0 %250
    %252 = vrot.lane.b32.xlu0 %v105, 126
    %v253 = vpop.permute.xlu0 %252
    %254 = vrot.lane.b32.xlu0 %v106, 126
    %v255 = vpop.permute.xlu0 %254
    %256 = vrot.lane.b32.xlu0 %v107, 126
    %v257 = vpop.permute.xlu0 %256
    %258 = vrot.lane.b32.xlu0 %v108, 126
    %v259 = vpop.permute.xlu0 %258
    %260 = vrot.lane.b32.xlu0 %v109, 126
    %v261 = vpop.permute.xlu0 %260
    %262 = vrot.lane.b32.xlu0 %v110, 126
    %v263 = vpop.permute.xlu0 %262
    %264 = vrot.lane.b32.xlu0 %v111, 126
    %v265 = vpop.permute.xlu0 %264
    %266 = vrot.lane.b32.xlu0 %v112, 126
    %v267 = vpop.permute.xlu0 %266
    %268 = vrot.lane.b32.xlu0 %v113, 126
    %v269 = vpop.permute.xlu0 %268
    %270 = vrot.lane.b32.xlu0 %v114, 126
    %v271 = vpop.permute.xlu0 %270
    %272 = vrot.lane.b32.xlu0 %v115, 126
    %v273 = vpop.permute.xlu0 %272
    %274 = vrot.lane.b32.xlu0 %v116, 126
    %v275 = vpop.permute.xlu0 %274
    %276 = vrot.lane.b32.xlu0 %v117, 126
    %v277 = vpop.permute.xlu0 %276
    %v294 = vmax.f32 %v230, %v247
    %v295 = vmax.f32 %v231, %v249
    %v296 = vmax.f32 %v232, %v251
    %v297 = vmax.f32 %v233, %v253
    %v298 = vmax.f32 %v234, %v255
    %v299 = vmax.f32 %v235, %v257
    %v300 = vmax.f32 %v236, %v259
    %v301 = vmax.f32 %v237, %v261
    %v302 = vmax.f32 %v238, %v263
    %v303 = vmax.f32 %v239, %v265
    %v304 = vmax.f32 %v240, %v267
    %v305 = vmax.f32 %v241, %v269
    %v306 = vmax.f32 %v242, %v271
    %v307 = vmax.f32 %v243, %v273
    %v308 = vmax.f32 %v244, %v275
    %v309 = vmax.f32 %v245, %v277
    %326 = vrot.lane.b32.xlu0 %v118, 127
    %v327 = vpop.permute.xlu0 %326
    %328 = vrot.lane.b32.xlu0 %v119, 127
    %v329 = vpop.permute.xlu0 %328
    %330 = vrot.lane.b32.xlu0 %v120, 127
    %v331 = vpop.permute.xlu0 %330
    %332 = vrot.lane.b32.xlu0 %v121, 127
    %v333 = vpop.permute.xlu0 %332
    %334 = vrot.lane.b32.xlu0 %v122, 127
    %v335 = vpop.permute.xlu0 %334
    %336 = vrot.lane.b32.xlu0 %v123, 127
    %v337 = vpop.permute.xlu0 %336
    %338 = vrot.lane.b32.xlu0 %v124, 127
    %v339 = vpop.permute.xlu0 %338
    %340 = vrot.lane.b32.xlu0 %v125, 127
    %v341 = vpop.permute.xlu0 %340
    %342 = vrot.lane.b32.xlu0 %v126, 127
    %v343 = vpop.permute.xlu0 %342
    %344 = vrot.lane.b32.xlu0 %v127, 127
    %v345 = vpop.permute.xlu0 %344
    %346 = vrot.lane.b32.xlu0 %v128, 127
    %v347 = vpop.permute.xlu0 %346
    %348 = vrot.lane.b32.xlu0 %v129, 127
    %v349 = vpop.permute.xlu0 %348
    %350 = vrot.lane.b32.xlu0 %v130, 127
    %v351 = vpop.permute.xlu0 %350
    %352 = vrot.lane.b32.xlu0 %v131, 127
    %v353 = vpop.permute.xlu0 %352
    %354 = vrot.lane.b32.xlu0 %v132, 127
    %v355 = vpop.permute.xlu0 %354
    %356 = vrot.lane.b32.xlu0 %v133, 127
    %v357 = vpop.permute.xlu0 %356
    %v374 = vmin.f32 %v118, %v327
    %v375 = vmin.f32 %v119, %v329
    %v376 = vmin.f32 %v120, %v331
    %v377 = vmin.f32 %v121, %v333
    %v378 = vmin.f32 %v122, %v335
    %v379 = vmin.f32 %v123, %v337
    %v380 = vmin.f32 %v124, %v339
    %v381 = vmin.f32 %v125, %v341
    %v382 = vmin.f32 %v126, %v343
    %v383 = vmin.f32 %v127, %v345
    %v384 = vmin.f32 %v128, %v347
    %v385 = vmin.f32 %v129, %v349
    %v386 = vmin.f32 %v130, %v351
    %v387 = vmin.f32 %v131, %v353
    %v388 = vmin.f32 %v132, %v355
    %v389 = vmin.f32 %v133, %v357
    %390 = vrot.lane.b32.xlu0 %v118, 126
    %v391 = vpop.permute.xlu0 %390
    %392 = vrot.lane.b32.xlu0 %v119, 126
    %v393 = vpop.permute.xlu0 %392
    %394 = vrot.lane.b32.xlu0 %v120, 126
    %v395 = vpop.permute.xlu0 %394
    %396 = vrot.lane.b32.xlu0 %v121, 126
    %v397 = vpop.permute.xlu0 %396
    %398 = vrot.lane.b32.xlu0 %v122, 126
    %v399 = vpop.permute.xlu0 %398
    %400 = vrot.lane.b32.xlu0 %v123, 126
    %v401 = vpop.permute.xlu0 %400
    %402 = vrot.lane.b32.xlu0 %v124, 126
    %v403 = vpop.permute.xlu0 %402
    %404 = vrot.lane.b32.xlu0 %v125, 126
    %v405 = vpop.permute.xlu0 %404
    %406 = vrot.lane.b32.xlu0 %v126, 126
    %v407 = vpop.permute.xlu0 %406
    %408 = vrot.lane.b32.xlu0 %v127, 126
    %v409 = vpop.permute.xlu0 %408
    %410 = vrot.lane.b32.xlu0 %v128, 126
    %v411 = vpop.permute.xlu0 %410
    %412 = vrot.lane.b32.xlu0 %v129, 126
    %v413 = vpop.permute.xlu0 %412
    %414 = vrot.lane.b32.xlu0 %v130, 126
    %v415 = vpop.permute.xlu0 %414
    %416 = vrot.lane.b32.xlu0 %v131, 126
    %v417 = vpop.permute.xlu0 %416
    %418 = vrot.lane.b32.xlu0 %v132, 126
    %v419 = vpop.permute.xlu0 %418
    %420 = vrot.lane.b32.xlu0 %v133, 126
    %v421 = vpop.permute.xlu0 %420
    %v438 = vmin.f32 %v374, %v391
    %v439 = vmin.f32 %v375, %v393
    %v440 = vmin.f32 %v376, %v395
    %v441 = vmin.f32 %v377, %v397
    %v442 = vmin.f32 %v378, %v399
    %v443 = vmin.f32 %v379, %v401
    %v444 = vmin.f32 %v380, %v403
    %v445 = vmin.f32 %v381, %v405
    %v446 = vmin.f32 %v382, %v407
    %v447 = vmin.f32 %v383, %v409
    %v448 = vmin.f32 %v384, %v411
    %v449 = vmin.f32 %v385, %v413
    %v450 = vmin.f32 %v386, %v415
    %v451 = vmin.f32 %v387, %v417
    %v452 = vmin.f32 %v388, %v419
    %v453 = vmin.f32 %v389, %v421
    %470 = vrot.lane.b32.xlu0 %v150, 127
    %v471 = vpop.permute.xlu0 %470
    %472 = vrot.lane.b32.xlu0 %v151, 127
    %v473 = vpop.permute.xlu0 %472
    %474 = vrot.lane.b32.xlu0 %v152, 127
    %v475 = vpop.permute.xlu0 %474
    %476 = vrot.lane.b32.xlu0 %v153, 127
    %v477 = vpop.permute.xlu0 %476
    %478 = vrot.lane.b32.xlu0 %v154, 127
    %v479 = vpop.permute.xlu0 %478
    %480 = vrot.lane.b32.xlu0 %v155, 127
    %v481 = vpop.permute.xlu0 %480
    %482 = vrot.lane.b32.xlu0 %v156, 127
    %v483 = vpop.permute.xlu0 %482
    %484 = vrot.lane.b32.xlu0 %v157, 127
    %v485 = vpop.permute.xlu0 %484
    %486 = vrot.lane.b32.xlu0 %v158, 127
    %v487 = vpop.permute.xlu0 %486
    %488 = vrot.lane.b32.xlu0 %v159, 127
    %v489 = vpop.permute.xlu0 %488
    %490 = vrot.lane.b32.xlu0 %v160, 127
    %v491 = vpop.permute.xlu0 %490
    %492 = vrot.lane.b32.xlu0 %v161, 127
    %v493 = vpop.permute.xlu0 %492
    %494 = vrot.lane.b32.xlu0 %v162, 127
    %v495 = vpop.permute.xlu0 %494
    %496 = vrot.lane.b32.xlu0 %v163, 127
    %v497 = vpop.permute.xlu0 %496
    %498 = vrot.lane.b32.xlu0 %v164, 127
    %v499 = vpop.permute.xlu0 %498
    %500 = vrot.lane.b32.xlu0 %v165, 127
    %v501 = vpop.permute.xlu0 %500
    %v518 = vmin.f32 %v150, %v471
    %v519 = vmin.f32 %v151, %v473
    %v520 = vmin.f32 %v152, %v475
    %v521 = vmin.f32 %v153, %v477
    %v522 = vmin.f32 %v154, %v479
    %v523 = vmin.f32 %v155, %v481
    %v524 = vmin.f32 %v156, %v483
    %v525 = vmin.f32 %v157, %v485
    %v526 = vmin.f32 %v158, %v487
    %v527 = vmin.f32 %v159, %v489
    %v528 = vmin.f32 %v160, %v491
    %v529 = vmin.f32 %v161, %v493
    %v530 = vmin.f32 %v162, %v495
    %v531 = vmin.f32 %v163, %v497
    %v532 = vmin.f32 %v164, %v499
    %v533 = vmin.f32 %v165, %v501
    %v534 = vmax.f32 %v150, %v471
    %v535 = vmax.f32 %v151, %v473
    %v536 = vmax.f32 %v152, %v475
    %v537 = vmax.f32 %v153, %v477
    %v538 = vmax.f32 %v154, %v479
    %v539 = vmax.f32 %v155, %v481
    %v540 = vmax.f32 %v156, %v483
    %v541 = vmax.f32 %v157, %v485
    %v542 = vmax.f32 %v158, %v487
    %v543 = vmax.f32 %v159, %v489
    %v544 = vmax.f32 %v160, %v491
    %v545 = vmax.f32 %v161, %v493
    %v546 = vmax.f32 %v162, %v495
    %v547 = vmax.f32 %v163, %v497
    %v548 = vmax.f32 %v164, %v499
    %v549 = vmax.f32 %v165, %v501
    %550 = vrot.lane.b32.xlu0 %v150, 126
    %v551 = vpop.permute.xlu0 %550
    %552 = vrot.lane.b32.xlu0 %v151, 126
    %v553 = vpop.permute.xlu0 %552
    %554 = vrot.lane.b32.xlu0 %v152, 126
    %v555 = vpop.permute.xlu0 %554
    %556 = vrot.lane.b32.xlu0 %v153, 126
    %v557 = vpop.permute.xlu0 %556
    %558 = vrot.lane.b32.xlu0 %v154, 126
    %v559 = vpop.permute.xlu0 %558
    %560 = vrot.lane.b32.xlu0 %v155, 126
    %v561 = vpop.permute.xlu0 %560
    %562 = vrot.lane.b32.xlu0 %v156, 126
    %v563 = vpop.permute.xlu0 %562
    %564 = vrot.lane.b32.xlu0 %v157, 126
    %v565 = vpop.permute.xlu0 %564
    %566 = vrot.lane.b32.xlu0 %v158, 126
    %v567 = vpop.permute.xlu0 %566
    %568 = vrot.lane.b32.xlu0 %v159, 126
    %v569 = vpop.permute.xlu0 %568
    %570 = vrot.lane.b32.xlu0 %v160, 126
    %v571 = vpop.permute.xlu0 %570
    %572 = vrot.lane.b32.xlu0 %v161, 126
    %v573 = vpop.permute.xlu0 %572
    %574 = vrot.lane.b32.xlu0 %v162, 126
    %v575 = vpop.permute.xlu0 %574
    %576 = vrot.lane.b32.xlu0 %v163, 126
    %v577 = vpop.permute.xlu0 %576
    %578 = vrot.lane.b32.xlu0 %v164, 126
    %v579 = vpop.permute.xlu0 %578
    %580 = vrot.lane.b32.xlu0 %v165, 126
    %v581 = vpop.permute.xlu0 %580
    %v598 = vmin.f32 %v534, %v551
    %v599 = vmin.f32 %v535, %v553
    %v600 = vmin.f32 %v536, %v555
    %v601 = vmin.f32 %v537, %v557
    %v602 = vmin.f32 %v538, %v559
    %v603 = vmin.f32 %v539, %v561
    %v604 = vmin.f32 %v540, %v563
    %v605 = vmin.f32 %v541, %v565
    %v606 = vmin.f32 %v542, %v567
    %v607 = vmin.f32 %v543, %v569
    %v608 = vmin.f32 %v544, %v571
    %v609 = vmin.f32 %v545, %v573
    %v610 = vmin.f32 %v546, %v575
    %v611 = vmin.f32 %v547, %v577
    %v612 = vmin.f32 %v548, %v579
    %v613 = vmin.f32 %v549, %v581
    %v614 = vmax.f32 %v518, %v598
    %v615 = vmax.f32 %v519, %v599
    %v616 = vmax.f32 %v520, %v600
    %v617 = vmax.f32 %v521, %v601
    %v618 = vmax.f32 %v522, %v602
    %v619 = vmax.f32 %v523, %v603
    %v620 = vmax.f32 %v524, %v604
    %v621 = vmax.f32 %v525, %v605
    %v622 = vmax.f32 %v526, %v606
    %v623 = vmax.f32 %v527, %v607
    %v624 = vmax.f32 %v528, %v608
    %v625 = vmax.f32 %v529, %v609
    %v626 = vmax.f32 %v530, %v610
    %v627 = vmax.f32 %v531, %v611
    %v628 = vmax.f32 %v532, %v612
    %v629 = vmax.f32 %v533, %v613
    %v630 = vmin.f32 %v294, %v614
    %v631 = vmin.f32 %v295, %v615
    %v632 = vmin.f32 %v296, %v616
    %v633 = vmin.f32 %v297, %v617
    %v634 = vmin.f32 %v298, %v618
    %v635 = vmin.f32 %v299, %v619
    %v636 = vmin.f32 %v300, %v620
    %v637 = vmin.f32 %v301, %v621
    %v638 = vmin.f32 %v302, %v622
    %v639 = vmin.f32 %v303, %v623
    %v640 = vmin.f32 %v304, %v624
    %v641 = vmin.f32 %v305, %v625
    %v642 = vmin.f32 %v306, %v626
    %v643 = vmin.f32 %v307, %v627
    %v644 = vmin.f32 %v308, %v628
    %v645 = vmin.f32 %v309, %v629
    %v646 = vmax.f32 %v294, %v614
    %v647 = vmax.f32 %v295, %v615
    %v648 = vmax.f32 %v296, %v616
    %v649 = vmax.f32 %v297, %v617
    %v650 = vmax.f32 %v298, %v618
    %v651 = vmax.f32 %v299, %v619
    %v652 = vmax.f32 %v300, %v620
    %v653 = vmax.f32 %v301, %v621
    %v654 = vmax.f32 %v302, %v622
    %v655 = vmax.f32 %v303, %v623
    %v656 = vmax.f32 %v304, %v624
    %v657 = vmax.f32 %v305, %v625
    %v658 = vmax.f32 %v306, %v626
    %v659 = vmax.f32 %v307, %v627
    %v660 = vmax.f32 %v308, %v628
    %v661 = vmax.f32 %v309, %v629
    %v662 = vmin.f32 %v646, %v438
    %v663 = vmin.f32 %v647, %v439
    %v664 = vmin.f32 %v648, %v440
    %v665 = vmin.f32 %v649, %v441
    %v666 = vmin.f32 %v650, %v442
    %v667 = vmin.f32 %v651, %v443
    %v668 = vmin.f32 %v652, %v444
    %v669 = vmin.f32 %v653, %v445
    %v670 = vmin.f32 %v654, %v446
    %v671 = vmin.f32 %v655, %v447
    %v672 = vmin.f32 %v656, %v448
    %v673 = vmin.f32 %v657, %v449
    %v674 = vmin.f32 %v658, %v450
    %v675 = vmin.f32 %v659, %v451
    %v676 = vmin.f32 %v660, %v452
    %v677 = vmin.f32 %v661, %v453
    %v678 = vmax.f32 %v630, %v662
    %v679 = vmax.f32 %v631, %v663
    %v680 = vmax.f32 %v632, %v664
    %v681 = vmax.f32 %v633, %v665
    %v682 = vmax.f32 %v634, %v666
    %v683 = vmax.f32 %v635, %v667
    %v684 = vmax.f32 %v636, %v668
    %v685 = vmax.f32 %v637, %v669
    %v686 = vmax.f32 %v638, %v670
    %v687 = vmax.f32 %v639, %v671
    %v688 = vmax.f32 %v640, %v672
    %v689 = vmax.f32 %v641, %v673
    %v690 = vmax.f32 %v642, %v674
    %v691 = vmax.f32 %v643, %v675
    %v692 = vmax.f32 %v644, %v676
    %v693 = vmax.f32 %v645, %v677
    %vm694 = vcmask 113664
    %695 = vst.msk [vmem:[%s1] sm:$0xff] %vm694, %v678
    %vm696 = vcmask 111616
    %697 = vst.msk [vmem:[%s1 + $0x8] sm:$0x3f] %vm696, %v679
    %698 = vst.msk [vmem:[%s1 + $0x10] sm:$0xff] %vm694, %v680
    %699 = vst.msk [vmem:[%s1 + $0x18] sm:$0x3f] %vm696, %v681
    %700 = vst.msk [vmem:[%s1 + $0x20] sm:$0xff] %vm694, %v682
    %701 = vst.msk [vmem:[%s1 + $0x28] sm:$0x3f] %vm696, %v683
    %702 = vst.msk [vmem:[%s1 + $0x30] sm:$0xff] %vm694, %v684
    %703 = vst.msk [vmem:[%s1 + $0x38] sm:$0x3f] %vm696, %v685
    %704 = vst.msk [vmem:[%s1 + $0x40] sm:$0xff] %vm694, %v686
    %705 = vst.msk [vmem:[%s1 + $0x48] sm:$0x3f] %vm696, %v687
    %706 = vst.msk [vmem:[%s1 + $0x50] sm:$0xff] %vm694, %v688
    %707 = vst.msk [vmem:[%s1 + $0x58] sm:$0x3f] %vm696, %v689
    %708 = vst.msk [vmem:[%s1 + $0x60] sm:$0xff] %vm694, %v690
    %709 = vst.msk [vmem:[%s1 + $0x68] sm:$0x3f] %vm696, %v691
    %710 = vst.msk [vmem:[%s1 + $0x70] sm:$0xff] %vm694, %v692
    %711 = vst.msk [vmem:[%s1 + $0x78] sm:$0x3f] %vm696, %v693
    // Predicated region
    $region10: #{tpu_custom_call.1} parent=1 // pred_check
      _
    $region11: #{tpu_custom_call.1} parent=1 // pred_check_branch
      %713 = sbr.rel (0) target = $region13
    $region12: #{tpu_custom_call.1} parent=1 // pred_region
      _
    $region13: #{tpu_custom_call.1} parent=1 // pred_fallthru
      _
    // Predicated region
    $region14: #{tpu_custom_call.1} parent=1 // pred_check
      _
    $region15: #{tpu_custom_call.1} parent=1 // pred_check_branch
      %715 = sbr.rel (0) target = $region17
    $region16: #{tpu_custom_call.1} parent=1 // pred_region
      _
    $region17: #{tpu_custom_call.1} parent=1 // pred_fallthru
      _
    %716 = vsyncpa [#allocation3], 1

</llo_original>
